<compile_context>
chip_gen: v6e
topology: v6e:2x2x1
jax: 0.10.0
libtpu: 0.0.40
codegen_flags: <defaults>
</compile_context>

<pallas_src>
import functools

import numpy as np
import jax
import jax.numpy as jnp
from jax.experimental import pallas as pl
from jax.experimental.pallas import tpu as pltpu


def _round_up(x, m):
    return ((x + m - 1) // m) * m


# -----------------------------------------------------------------------------
# Pallas kernel: one (TM, TN) tile of one batch element's cost matrix
# -----------------------------------------------------------------------------
def _cost_kernel(probs_ref, pfeat_ref, onehot_ref, tfeat_ref, c_ref,
                 *, w_giou, sign_bbox):
    probs = probs_ref[...]      # [TM, Cc] bf16  softmax probabilities
    pf = pfeat_ref[...]         # [TM, 8]  f32   (|w_bbox|*cx,cy,w,h, x1,y1,x2,y2)
    oh = onehot_ref[...]        # [Cc, TN] bf16  one-hot, pre-scaled by -w_class
    tf = tfeat_ref[...]         # [8, TN]  f32   (|w_bbox|*cx,cy,w,h, x1,y1,x2,y2)

    # ---- classification cost: -w_class * prob[:, tgt_ids], via MXU ----------
    acc = jax.lax.dot_general(
        probs, oh,
        dimension_numbers=(((1,), (0,)), ((), ())),
        preferred_element_type=jnp.float32)                     # [TM, TN]

    # ---- L1 bbox cost in cxcywh space (w_bbox folded into the features) -----
    l1 = jnp.abs(pf[:, 0:1] - tf[0:1, :])
    l1 = l1 + jnp.abs(pf[:, 1:2] - tf[1:2, :])
    l1 = l1 + jnp.abs(pf[:, 2:3] - tf[2:3, :])
    l1 = l1 + jnp.abs(pf[:, 3:4] - tf[3:4, :])
    if sign_bbox != 1.0:        # trace-time branch: only if w_bbox < 0
        l1 = sign_bbox * l1
    acc = acc + l1

    # ---- GIoU cost ------------------------------------------------------------
    px1 = pf[:, 4:5]
    py1 = pf[:, 5:6]
    px2 = pf[:, 6:7]
    py2 = pf[:, 7:8]
    tx1 = tf[4:5, :]
    ty1 = tf[5:6, :]
    tx2 = tf[6:7, :]
    ty2 = tf[7:8, :]

    area_p = (px2 - px1) * (py2 - py1)                           # [TM, 1]
    area_t = (tx2 - tx1) * (ty2 - ty1)                           # [1, TN]

    iw = jnp.maximum(jnp.minimum(px2, tx2) - jnp.maximum(px1, tx1), 0.0)
    ih = jnp.maximum(jnp.minimum(py2, ty2) - jnp.maximum(py1, ty1), 0.0)
    inter = iw * ih                                              # [TM, TN]
    union = area_p + area_t - inter                              # [TM, TN]

    # Boxes are valid (x2>=x1, y2>=y1) so the enclosing extents need no clamp.
    cw = jnp.maximum(px2, tx2) - jnp.minimum(px1, tx1)
    ch = jnp.maximum(py2, ty2) - jnp.minimum(py1, ty1)
    area_c = cw * ch                                             # [TM, TN]

    eps = 1e-9  # guard degenerate boxes so 0*inf doesn't poison the assignment
    r_u = pl.reciprocal(jnp.maximum(union, eps), approx=True)
    r_c = pl.reciprocal(jnp.maximum(area_c, eps), approx=True)
    # giou = iou - (area_c - union)/area_c = inter*r_u - 1 + union*r_c
    giou = inter * r_u - 1.0 + union * r_c
    acc = acc + (-w_giou) * giou

    c_ref[...] = acc.astype(c_ref.dtype)


# -----------------------------------------------------------------------------
# Wrapper: per-batch cost matrices [bs, nq_pad, T_pad]
# -----------------------------------------------------------------------------
def compute_cost_matrices(pred_logits, pred_boxes, labels_list, boxes_list,
                          cost_class=1.0, cost_bbox=1.0, cost_giou=1.0,
                          *, tile_m=256, tile_n=512):
    """pred_logits [bs, nq, Cc], pred_boxes [bs, nq, 4] (cxcywh),
    labels_list / boxes_list: per-batch [T_b] / [T_b, 4]."""
    bs, nq, cc = pred_logits.shape
    sizes = [int(b.shape[0]) for b in boxes_list]
    t_max = max(sizes) if sizes else 0

    # ---- tile / pad selection -------------------------------------------------
    t_pad = _round_up(max(t_max, 1), 128)
    n_n = -(-t_pad // tile_n)
    tn = _round_up(-(-t_pad // n_n), 128)
    t_pad = _round_up(t_pad, tn)

    nq_pad = _round_up(nq, 16)           # multiple of 16 -> bf16-friendly tiles
    n_m = -(-nq_pad // tile_m)
    tm = _round_up(-(-nq_pad // n_m), 16)
    nq_pad = _round_up(nq_pad, tm)

    # v7x has 2 TensorCores sharded over parallel grid axes: make sure the
    # grid has at least 2 tiles.
    if bs * (nq_pad // tm) * (t_pad // tn) < 2 and nq_pad >= 32:
        tm = _round_up(nq_pad // 2, 16)
        nq_pad = _round_up(nq_pad, tm)

    abs_wbbox = float(abs(cost_bbox))
    sign_bbox = 1.0 if cost_bbox >= 0 else -1.0

    # ---- prediction side ------------------------------------------------------
    logits = pred_logits.astype(jnp.float32)
    probs = jax.nn.softmax(logits, axis=-1)                      # [bs, nq, Cc]
    pb = pred_boxes.astype(jnp.float32)                          # [bs, nq, 4]
    if nq_pad != nq:
        pad_rows = nq_pad - nq
        probs = jnp.concatenate(
            [probs, jnp.zeros((bs, pad_rows, cc), jnp.float32)], axis=1)
        pad_boxes = jnp.tile(
            jnp.array([[[0.5, 0.5, 1.0, 1.0]]], jnp.float32), (bs, pad_rows, 1))
        pb = jnp.concatenate([pb, pad_boxes], axis=1)
    probs_bf16 = probs.astype(jnp.bfloat16)                      # [bs, nq_pad, Cc]
    p_xy1 = pb[..., :2] - 0.5 * pb[..., 2:]
    p_xy2 = pb[..., :2] + 0.5 * pb[..., 2:]
    pfeat = jnp.concatenate([abs_wbbox * pb, p_xy1, p_xy2], axis=-1)  # [bs,nq_pad,8]

    # ---- target side (padded per batch to t_pad) ------------------------------
    ids_rows, box_rows = [], []
    dummy_box = jnp.array([[0.5, 0.5, 1.0, 1.0]], jnp.float32)
    for b in range(bs):
        n_b = sizes[b]
        lb = labels_list[b].astype(jnp.int32).reshape(n_b)
        bx = boxes_list[b].astype(jnp.float32).reshape(n_b, 4)
        pad_n = t_pad - n_b
        ids_rows.append(jnp.concatenate(
            [lb, jnp.full((pad_n,), -1, jnp.int32)]))
        box_rows.append(jnp.concatenate(
            [bx, jnp.tile(dummy_box, (pad_n, 1))], axis=0))
    ids = jnp.stack(ids_rows)                                    # [bs, t_pad]
    tb = jnp.stack(box_rows)                                     # [bs, t_pad, 4]

    t_xy1 = tb[..., :2] - 0.5 * tb[..., 2:]
    t_xy2 = tb[..., :2] + 0.5 * tb[..., 2:]
    tfeat = jnp.concatenate([abs_wbbox * tb, t_xy1, t_xy2], axis=-1)  # [bs,t_pad,8]
    tfeat = jnp.transpose(tfeat, (0, 2, 1))                      # [bs, 8, t_pad]

    # one-hot [bs, Cc, t_pad], pre-scaled by -cost_class (padded cols = all zero)
    class_iota = jnp.arange(cc, dtype=jnp.int32)[None, :, None]
    onehot = (class_iota == ids[:, None, :]).astype(jnp.float32)
    onehot = ((-float(cost_class)) * onehot).astype(jnp.bfloat16)

    kernel = functools.partial(_cost_kernel, w_giou=float(cost_giou),
                               sign_bbox=sign_bbox)

    c = pl.pallas_call(
        kernel,
        out_shape=jax.ShapeDtypeStruct((bs, nq_pad, t_pad), jnp.float32),
        grid=(bs, nq_pad // tm, t_pad // tn),
        in_specs=[
            pl.BlockSpec((None, tm, cc), lambda b, i, j: (b, i, 0)),
            pl.BlockSpec((None, tm, 8), lambda b, i, j: (b, i, 0)),
            pl.BlockSpec((None, cc, tn), lambda b, i, j: (b, 0, j)),
            pl.BlockSpec((None, 8, tn), lambda b, i, j: (b, 0, j)),
        ],
        out_specs=pl.BlockSpec((None, tm, tn), lambda b, i, j: (b, i, j)),
        compiler_params=pltpu.CompilerParams(
            dimension_semantics=("parallel", "parallel", "parallel"),
            vmem_limit_bytes=32 * 1024 * 1024),
    )(probs_bf16, pfeat, onehot, tfeat)

    return c  # [bs, nq_pad, t_pad]; host slices [b, :nq, :sizes[b]]


# -----------------------------------------------------------------------------
# Host-side exact linear sum assignment (Hungarian / Jonker-Volgenant, e-maxx),
# inner column scan vectorized with numpy. Matches
# scipy.optimize.linear_sum_assignment semantics for min-cost matching.
# -----------------------------------------------------------------------------
def _linear_sum_assignment(cost):
    cost = np.asarray(cost, dtype=np.float64)
    transposed = cost.shape[0] > cost.shape[1]
    if transposed:
        cost = cost.T
    n, m = cost.shape  # n <= m
    u = np.zeros(n + 1)
    v = np.zeros(m + 1)
    p = np.zeros(m + 1, dtype=np.int64)
    way = np.zeros(m + 1, dtype=np.int64)
    for i in range(1, n + 1):
        p[0] = i
        j0 = 0
        minv = np.full(m + 1, np.inf)
        used = np.zeros(m + 1, dtype=bool)
        while True:
            used[j0] = True
            i0 = p[j0]
            cur = cost[i0 - 1, :] - u[i0] - v[1:]
            better = (~used[1:]) & (cur < minv[1:])
            minv[1:] = np.where(better, cur, minv[1:])
            way[1:] = np.where(better, j0, way[1:])
            cand = np.where(used[1:], np.inf, minv[1:])
            j1 = int(np.argmin(cand)) + 1
            delta = cand[j1 - 1]
            u[p[used]] += delta
            v[used] -= delta
            minv[~used] -= delta
            j0 = j1
            if p[j0] == 0:
                break
        while True:
            j1 = way[j0]
            p[j0] = p[j1]
            j0 = j1
            if j0 == 0:
                break
    pairs = [(int(p[j]) - 1, j - 1) for j in range(1, m + 1) if p[j] != 0]
    if transposed:
        pairs = [(c_, r_) for r_, c_ in pairs]
    pairs.sort()
    rows = np.array([r for r, _ in pairs], dtype=np.int64)
    cols = np.array([c for _, c in pairs], dtype=np.int64)
    return rows, cols


# -----------------------------------------------------------------------------
# The matcher (mirrors the PyTorch module's forward)
# -----------------------------------------------------------------------------
class HungarianMatcher:
    def __init__(self, cost_class: float = 1.0, cost_bbox: float = 1.0,
                 cost_giou: float = 1.0):
        assert cost_class != 0 or cost_bbox != 0 or cost_giou != 0, \
            "all costs cant be 0"
        self.cost_class = cost_class
        self.cost_bbox = cost_bbox
        self.cost_giou = cost_giou

    def __call__(self, outputs, targets):
        pred_logits = outputs["pred_logits"]
        pred_boxes = outputs["pred_boxes"]
        bs, num_queries = pred_logits.shape[:2]
        labels_list = [t["labels"] for t in targets]
        boxes_list = [t["boxes"] for t in targets]
        sizes = [int(b.shape[0]) for b in boxes_list]

        c = compute_cost_matrices(pred_logits, pred_boxes, labels_list,
                                  boxes_list, self.cost_class, self.cost_bbox,
                                  self.cost_giou)
        c = np.asarray(jax.block_until_ready(c))

        # TODO(synk): linear_sum_assignment is an inherently sequential
        # combinatorial algorithm; it stays on the host (numpy) operating on
        # the Pallas-computed per-batch cost blocks.
        indices = []
        for i in range(bs):
            sub = c[i, :num_queries, :sizes[i]]
            indices.append(_linear_sum_assignment(sub))
        return indices


if __name__ == "__main__":
    key = jax.random.PRNGKey(0)
    bs, num_queries, num_classes = 2, 8, 32
    sizes = [3, 5]  # number of ground-truth boxes per batch element

    k1, k2, k3, k4 = jax.random.split(key, 4)
    pred_logits = jax.random.normal(k1, (bs, num_queries, num_classes),
                                    dtype=jnp.float32)
    pred_boxes = jax.nn.sigmoid(
        jax.random.normal(k2, (bs, num_queries, 4), dtype=jnp.float32))

    targets = []
    lkeys = jax.random.split(k3, bs)
    bkeys = jax.random.split(k4, bs)
    for i, sz in enumerate(sizes):
        labels = jax.random.randint(lkeys[i], (sz,), 0, num_classes,
                                    dtype=jnp.int32)
        boxes = jax.nn.sigmoid(
            jax.random.normal(bkeys[i], (sz, 4), dtype=jnp.float32))
        targets.append({"labels": labels, "boxes": boxes})

    matcher = HungarianMatcher(cost_class=1.0, cost_bbox=1.0, cost_giou=1.0)
    outputs = {"pred_logits": pred_logits, "pred_boxes": pred_boxes}
    indices = matcher(outputs, targets)

    # basic sanity: one (pred, target) pair list per batch element, 1-to-1
    assert len(indices) == bs
    for (ri, ci), sz in zip(indices, sizes):
        assert len(ri) == len(ci) == min(num_queries, sz)
        assert len(set(ri.tolist())) == len(ri)
        assert len(set(ci.tolist())) == len(ci)

    print("KERNEL_OK")
</pallas_src>

<mosaic_0001>
module attributes {stable_mosaic.version = 11 : i64} {
  func.func @_cost_kernel(%arg0: i32, %arg1: i32, %arg2: i32, %arg3: memref<1x16x32xbf16, #tpu.memory_space<vmem>>, %arg4: memref<1x16x8xf32, #tpu.memory_space<vmem>>, %arg5: memref<1x32x128xbf16, #tpu.memory_space<vmem>>, %arg6: memref<1x8x128xf32, #tpu.memory_space<vmem>>, %arg7: memref<1x16x128xf32, #tpu.memory_space<vmem>>) attributes {dimension_semantics = [#tpu.dimension_semantics<parallel>, #tpu.dimension_semantics<parallel>, #tpu.dimension_semantics<parallel>], iteration_bounds = array<i64: 2, 1, 1>, scalar_prefetch = 0 : i64, scratch_operands = 0 : i64, tpu.core_type = #tpu.core_type<tc>, window_params = [{transform_indices = @transform_0, window_bounds = array<i64: 1, 16, 32>}, {transform_indices = @transform_1, window_bounds = array<i64: 1, 16, 8>}, {transform_indices = @transform_2, window_bounds = array<i64: 1, 32, 128>}, {transform_indices = @transform_3, window_bounds = array<i64: 1, 8, 128>}, {transform_indices = @transform_4, window_bounds = array<i64: 1, 16, 128>}]} {
    %c0 = arith.constant 0 : index
    %c0_0 = arith.constant 0 : index
    %c0_1 = arith.constant 0 : index
    %0 = vector.load %arg3[%c0, %c0_0, %c0_1] : memref<1x16x32xbf16, #tpu.memory_space<vmem>>, vector<1x16x32xbf16>
    %1 = vector.shape_cast %0 : vector<1x16x32xbf16> to vector<16x32xbf16>
    %c0_2 = arith.constant 0 : index
    %c0_3 = arith.constant 0 : index
    %c0_4 = arith.constant 0 : index
    %2 = vector.load %arg4[%c0_2, %c0_3, %c0_4] : memref<1x16x8xf32, #tpu.memory_space<vmem>>, vector<1x16x8xf32>
    %3 = vector.shape_cast %2 : vector<1x16x8xf32> to vector<16x8xf32>
    %c0_5 = arith.constant 0 : index
    %c0_6 = arith.constant 0 : index
    %c0_7 = arith.constant 0 : index
    %4 = vector.load %arg5[%c0_5, %c0_6, %c0_7] : memref<1x32x128xbf16, #tpu.memory_space<vmem>>, vector<1x32x128xbf16>
    %5 = vector.shape_cast %4 : vector<1x32x128xbf16> to vector<32x128xbf16>
    %c0_8 = arith.constant 0 : index
    %c0_9 = arith.constant 0 : index
    %c0_10 = arith.constant 0 : index
    %6 = vector.load %arg6[%c0_8, %c0_9, %c0_10] : memref<1x8x128xf32, #tpu.memory_space<vmem>>, vector<1x8x128xf32>
    %7 = vector.shape_cast %6 : vector<1x8x128xf32> to vector<8x128xf32>
    %cst = arith.constant dense<0.000000e+00> : vector<16x128xf32>
    %8 = tpu.matmul %1, %5, %cst {dimension_numbers = #tpu.dot_dimension_numbers<[1], [0], [0], [1], [0, 0, 1, 1], [], []>} : vector<16x32xbf16>, vector<32x128xbf16>, vector<16x128xf32> -> vector<16x128xf32>
    %9 = vector.extract_strided_slice %3 {offsets = [0, 0], sizes = [16, 1], strides = [1, 1]} : vector<16x8xf32> to vector<16x1xf32>
    %10 = vector.extract_strided_slice %7 {offsets = [0, 0], sizes = [1, 128], strides = [1, 1]} : vector<8x128xf32> to vector<1x128xf32>
    %11 = vector.broadcast %9 : vector<16x1xf32> to vector<16x128xf32>
    %12 = vector.broadcast %10 : vector<1x128xf32> to vector<16x128xf32>
    %13 = arith.subf %11, %12 : vector<16x128xf32>
    %14 = math.absf %13 : vector<16x128xf32>
    %15 = vector.extract_strided_slice %3 {offsets = [0, 1], sizes = [16, 1], strides = [1, 1]} : vector<16x8xf32> to vector<16x1xf32>
    %16 = vector.extract_strided_slice %7 {offsets = [1, 0], sizes = [1, 128], strides = [1, 1]} : vector<8x128xf32> to vector<1x128xf32>
    %17 = vector.broadcast %15 : vector<16x1xf32> to vector<16x128xf32>
    %18 = vector.broadcast %16 : vector<1x128xf32> to vector<16x128xf32>
    %19 = arith.subf %17, %18 : vector<16x128xf32>
    %20 = math.absf %19 : vector<16x128xf32>
    %21 = arith.addf %14, %20 : vector<16x128xf32>
    %22 = vector.extract_strided_slice %3 {offsets = [0, 2], sizes = [16, 1], strides = [1, 1]} : vector<16x8xf32> to vector<16x1xf32>
    %23 = vector.extract_strided_slice %7 {offsets = [2, 0], sizes = [1, 128], strides = [1, 1]} : vector<8x128xf32> to vector<1x128xf32>
    %24 = vector.broadcast %22 : vector<16x1xf32> to vector<16x128xf32>
    %25 = vector.broadcast %23 : vector<1x128xf32> to vector<16x128xf32>
    %26 = arith.subf %24, %25 : vector<16x128xf32>
    %27 = math.absf %26 : vector<16x128xf32>
    %28 = arith.addf %21, %27 : vector<16x128xf32>
    %29 = vector.extract_strided_slice %3 {offsets = [0, 3], sizes = [16, 1], strides = [1, 1]} : vector<16x8xf32> to vector<16x1xf32>
    %30 = vector.extract_strided_slice %7 {offsets = [3, 0], sizes = [1, 128], strides = [1, 1]} : vector<8x128xf32> to vector<1x128xf32>
    %31 = vector.broadcast %29 : vector<16x1xf32> to vector<16x128xf32>
    %32 = vector.broadcast %30 : vector<1x128xf32> to vector<16x128xf32>
    %33 = arith.subf %31, %32 : vector<16x128xf32>
    %34 = math.absf %33 : vector<16x128xf32>
    %35 = arith.addf %28, %34 : vector<16x128xf32>
    %36 = arith.addf %8, %35 : vector<16x128xf32>
    %37 = vector.extract_strided_slice %3 {offsets = [0, 4], sizes = [16, 1], strides = [1, 1]} : vector<16x8xf32> to vector<16x1xf32>
    %38 = vector.extract_strided_slice %3 {offsets = [0, 5], sizes = [16, 1], strides = [1, 1]} : vector<16x8xf32> to vector<16x1xf32>
    %39 = vector.extract_strided_slice %3 {offsets = [0, 6], sizes = [16, 1], strides = [1, 1]} : vector<16x8xf32> to vector<16x1xf32>
    %40 = vector.extract_strided_slice %3 {offsets = [0, 7], sizes = [16, 1], strides = [1, 1]} : vector<16x8xf32> to vector<16x1xf32>
    %41 = vector.extract_strided_slice %7 {offsets = [4, 0], sizes = [1, 128], strides = [1, 1]} : vector<8x128xf32> to vector<1x128xf32>
    %42 = vector.extract_strided_slice %7 {offsets = [5, 0], sizes = [1, 128], strides = [1, 1]} : vector<8x128xf32> to vector<1x128xf32>
    %43 = vector.extract_strided_slice %7 {offsets = [6, 0], sizes = [1, 128], strides = [1, 1]} : vector<8x128xf32> to vector<1x128xf32>
    %44 = vector.extract_strided_slice %7 {offsets = [7, 0], sizes = [1, 128], strides = [1, 1]} : vector<8x128xf32> to vector<1x128xf32>
    %45 = arith.subf %39, %37 : vector<16x1xf32>
    %46 = arith.subf %40, %38 : vector<16x1xf32>
    %47 = arith.mulf %45, %46 : vector<16x1xf32>
    %48 = arith.subf %43, %41 : vector<1x128xf32>
    %49 = arith.subf %44, %42 : vector<1x128xf32>
    %50 = arith.mulf %48, %49 : vector<1x128xf32>
    %51 = vector.broadcast %39 : vector<16x1xf32> to vector<16x128xf32>
    %52 = vector.broadcast %43 : vector<1x128xf32> to vector<16x128xf32>
    %53 = arith.minimumf %51, %52 : vector<16x128xf32>
    %54 = vector.broadcast %37 : vector<16x1xf32> to vector<16x128xf32>
    %55 = vector.broadcast %41 : vector<1x128xf32> to vector<16x128xf32>
    %56 = arith.maximumf %54, %55 : vector<16x128xf32>
    %57 = arith.subf %53, %56 : vector<16x128xf32>
    %cst_11 = arith.constant 0.000000e+00 : f32
    %58 = vector.broadcast %cst_11 : f32 to vector<16x128xf32>
    %59 = arith.maximumf %57, %58 : vector<16x128xf32>
    %60 = vector.broadcast %40 : vector<16x1xf32> to vector<16x128xf32>
    %61 = vector.broadcast %44 : vector<1x128xf32> to vector<16x128xf32>
    %62 = arith.minimumf %60, %61 : vector<16x128xf32>
    %63 = vector.broadcast %38 : vector<16x1xf32> to vector<16x128xf32>
    %64 = vector.broadcast %42 : vector<1x128xf32> to vector<16x128xf32>
    %65 = arith.maximumf %63, %64 : vector<16x128xf32>
    %66 = arith.subf %62, %65 : vector<16x128xf32>
    %cst_12 = arith.constant 0.000000e+00 : f32
    %67 = vector.broadcast %cst_12 : f32 to vector<16x128xf32>
    %68 = arith.maximumf %66, %67 : vector<16x128xf32>
    %69 = arith.mulf %59, %68 : vector<16x128xf32>
    %70 = vector.broadcast %47 : vector<16x1xf32> to vector<16x128xf32>
    %71 = vector.broadcast %50 : vector<1x128xf32> to vector<16x128xf32>
    %72 = arith.addf %70, %71 : vector<16x128xf32>
    %73 = arith.subf %72, %69 : vector<16x128xf32>
    %74 = vector.broadcast %39 : vector<16x1xf32> to vector<16x128xf32>
    %75 = vector.broadcast %43 : vector<1x128xf32> to vector<16x128xf32>
    %76 = arith.maximumf %74, %75 : vector<16x128xf32>
    %77 = vector.broadcast %37 : vector<16x1xf32> to vector<16x128xf32>
    %78 = vector.broadcast %41 : vector<1x128xf32> to vector<16x128xf32>
    %79 = arith.minimumf %77, %78 : vector<16x128xf32>
    %80 = arith.subf %76, %79 : vector<16x128xf32>
    %81 = vector.broadcast %40 : vector<16x1xf32> to vector<16x128xf32>
    %82 = vector.broadcast %44 : vector<1x128xf32> to vector<16x128xf32>
    %83 = arith.maximumf %81, %82 : vector<16x128xf32>
    %84 = vector.broadcast %38 : vector<16x1xf32> to vector<16x128xf32>
    %85 = vector.broadcast %42 : vector<1x128xf32> to vector<16x128xf32>
    %86 = arith.minimumf %84, %85 : vector<16x128xf32>
    %87 = arith.subf %83, %86 : vector<16x128xf32>
    %88 = arith.mulf %80, %87 : vector<16x128xf32>
    %cst_13 = arith.constant 9.99999971E-10 : f32
    %89 = vector.broadcast %cst_13 : f32 to vector<16x128xf32>
    %90 = arith.maximumf %73, %89 : vector<16x128xf32>
    %91 = tpu.reciprocal %90 {approx = true} : vector<16x128xf32> -> vector<16x128xf32>
    %cst_14 = arith.constant 9.99999971E-10 : f32
    %92 = vector.broadcast %cst_14 : f32 to vector<16x128xf32>
    %93 = arith.maximumf %88, %92 : vector<16x128xf32>
    %94 = tpu.reciprocal %93 {approx = true} : vector<16x128xf32> -> vector<16x128xf32>
    %95 = arith.mulf %69, %91 : vector<16x128xf32>
    %cst_15 = arith.constant 1.000000e+00 : f32
    %96 = vector.broadcast %cst_15 : f32 to vector<16x128xf32>
    %97 = arith.subf %95, %96 : vector<16x128xf32>
    %98 = arith.mulf %73, %94 : vector<16x128xf32>
    %99 = arith.addf %97, %98 : vector<16x128xf32>
    %cst_16 = arith.constant -1.000000e+00 : f32
    %100 = vector.broadcast %cst_16 : f32 to vector<16x128xf32>
    %101 = arith.mulf %100, %99 : vector<16x128xf32>
    %102 = arith.addf %36, %101 : vector<16x128xf32>
    %c0_17 = arith.constant 0 : index
    %c0_18 = arith.constant 0 : index
    %c0_19 = arith.constant 0 : index
    %103 = vector.load %arg7[%c0_17, %c0_18, %c0_19] : memref<1x16x128xf32, #tpu.memory_space<vmem>>, vector<1x16x128xf32>
    %104 = vector.shape_cast %103 : vector<1x16x128xf32> to vector<16x128xf32>
    %105 = vector.shape_cast %102 : vector<16x128xf32> to vector<1x16x128xf32>
    tpu.vector_store %arg7[%c0_17, %c0_18, %c0_19], %105 {strides = array<i32>} : memref<1x16x128xf32, #tpu.memory_space<vmem>>, vector<1x16x128xf32>,
    return
  }
  func.func @transform_0(%arg0: i32, %arg1: i32, %arg2: i32) -> (i32, i32, i32) {
    %c0_i32 = arith.constant 0 : i32
    %c0_i32_0 = arith.constant 0 : i32
    return %arg0, %arg1, %c0_i32 : i32, i32, i32
  }
  func.func @transform_1(%arg0: i32, %arg1: i32, %arg2: i32) -> (i32, i32, i32) {
    %c0_i32 = arith.constant 0 : i32
    %c0_i32_0 = arith.constant 0 : i32
    return %arg0, %arg1, %c0_i32 : i32, i32, i32
  }
  func.func @transform_2(%arg0: i32, %arg1: i32, %arg2: i32) -> (i32, i32, i32) {
    %c0_i32 = arith.constant 0 : i32
    %c0_i32_0 = arith.constant 0 : i32
    return %arg0, %c0_i32, %arg2 : i32, i32, i32
  }
  func.func @transform_3(%arg0: i32, %arg1: i32, %arg2: i32) -> (i32, i32, i32) {
    %c0_i32 = arith.constant 0 : i32
    %c0_i32_0 = arith.constant 0 : i32
    return %arg0, %c0_i32, %arg2 : i32, i32, i32
  }
  func.func @transform_4(%arg0: i32, %arg1: i32, %arg2: i32) -> (i32, i32, i32) {
    %c0_i32 = arith.constant 0 : i32
    return %arg0, %arg1, %arg2 : i32, i32, i32
  }
}

</mosaic_0001>

<llo_original>
// kernel: tpu_custom_call.1
$region0: #{tpu_custom_call.1}
  #allocation0 [shape = 'u32[]', space=smem, size = 0x4, offset = 0x4, fixed_abs, tag = 'smem constant byte address 0x4 - core index']
  #allocation1 [shape = 'u32[144,128]{1,0:T(1,128)}', space=vmem, size = 0x12000, scoped, tag = 'internal scratch']
  %s0 = inlined_call_operand.vmem [shape: bf16[2,16,32], index: 0, kind: input, shape index: {}]
  %s1 = inlined_call_operand.vmem [shape: f32[2,16,8], index: 1, kind: input, shape index: {}]
  %s2 = inlined_call_operand.vmem [shape: bf16[2,32,128], index: 2, kind: input, shape index: {}]
  %s3 = inlined_call_operand.hbm [shape: f32[2,8,128], index: 3, kind: input, shape index: {}]
  %s4 = inlined_call_operand.hbm [shape: f32[2,16,128], index: 4, kind: output, shape index: {}]
  %s5 = sld [smem:[#allocation0]]
  $region53: #{tpu_custom_call.1} parent=0
    _
  %s7 = ssub.s32 1, %s5
  %s8 = scalar_select 0, %s7, %s5
  $region1: #{tpu_custom_call.1} parent=0
    #allocation2 [shape = 'u8[8192]{0}', space=vmem, size = 0x2000, scoped, tag = 'input window, operand 3']
    #allocation3 [shape = 's32[2]{0}', space=sflag, size = 0x8, scoped, tag = 'scoped memory for tpu_custom_call.1']
    #allocation4 [shape = 's32[2]{0}', space=sflag, size = 0x8, scoped, tag = 'scoped memory for tpu_custom_call.1']
    #allocation5 [shape = 'u8[16384]{0}', space=vmem, size = 0x4000, scoped, tag = 'output window, operand 0']
    %9 = vsyncpa [#allocation3], 0
    %s10 = scalar_lea.sflag [#allocation3], 1
    %11 = vsyncpa %s10, 0
    %12 = vsyncpa [#allocation4], 0
    %s13 = scalar_lea.sflag [#allocation4], 1
    %14 = vsyncpa %s13, 0
    loop: start=0, step=1, limit=4
    $region2: #{tpu_custom_call.1} parent=1 // loop_pre_header
      _
    $region3: #{tpu_custom_call.1} parent=1 // loop_header
      %s16 = sphi 0, %s20
      %p17 = scmp.ge.s32.totalorder %s16, 4
      %s23 = sphi 0, %s42
      %s24 = sphi 0, %s38
      %s25 = sphi 0, %s34
      %s26 = sphi 0, %s23
      %s27 = sphi 0, %s24
      %s28 = sphi 0, %s25
      %s29 = sphi 0, %s26
      %s30 = sphi 0, %s27
      %s31 = sphi 0, %s28
      %s47 = sphi 0, %s49
      %s50 = sphi 0, %s47
      %s51 = sphi 0, %s50
      %s67 = sphi 0, %s51
      %s75 = sphi 0, %s77
      %s78 = sphi 0, %s75
      %s79 = sphi 0, %s78
      %s95 = sphi 0, %s79
      %s103 = sphi 0, %s105
      %s106 = sphi 0, %s103
      %s107 = sphi 0, %s106
      %s123 = sphi 0, %s107
      %s131 = sphi 0, %s133
      %s134 = sphi 0, %s131
      %s135 = sphi 0, %s134
      %s151 = sphi 0, %s135
      %s161 = sphi 0, %s163
      %s164 = sphi 0, %s161
      %s165 = sphi 0, %s164
      %s181 = sphi 0, %s165
    $region4: #{tpu_custom_call.1} parent=1 // loop_header_branch
      %19 = sbr.rel (%p17) target = $region8
    $region5: #{tpu_custom_call.1} parent=1 // loop_body
      %s21 = ssub.s32 %s16, 1
      %s22 = ssub.s32 %s16, 2
      %s32 = sadd.s32 1, %s25
      %p33 = scmp.ge.s32.totalorder %s32, 1
      %s34 = scalar_select %p33, 0, %s32
      %s35 = sadd.s32 1, %s24
      %s36 = scalar_select %p33, %s35, %s24
      %p37 = scmp.ge.s32.totalorder %s36, 1
      %s38 = scalar_select %p37, 0, %s36
      %s39 = sadd.s32 1, %s23
      %s40 = scalar_select %p37, %s39, %s23
      %p41 = scmp.ge.s32.totalorder %s40, 2
      %s42 = scalar_select %p41, 0, %s40
      %s43 = ssub.s32 %s23, %s42
      %s44 = ssub.s32 %s24, %s38
      %s45 = sor.u32 %s43, %s44
      %p46 = scmp.eq.s32.totalorder %s45, 0
      %s48 = sadd.s32 %s47, 1
      %s49 = scalar_select %p46, %s47, %s48
      %p52 = pneg %p46
      %p53 = scmp.eq.s32.totalorder %s16, 1
      %p54 = por %p52, %p53
      %p55 = scmp.ne.s32.totalorder %s47, %s50
      %p56 = scmp.eq.s32.totalorder %s16, 0
      %p57 = por %p55, %p56
      %p58 = scmp.ne.s32.totalorder %s47, %s50
      %p59 = scmp.eq.s32.totalorder %s21, 1
      %p60 = por %p58, %p59
      %p61 = scmp.ne.s32.totalorder %s50, %s51
      %p62 = scmp.eq.s32.totalorder %s21, 0
      %p63 = por %p61, %p62
      %p64 = scmp.ne.s32.totalorder %s50, %s51
      %p65 = scmp.eq.s32.totalorder %s22, 1
      %p66 = por %p64, %p65
      %p68 = scmp.ne.s32.totalorder %s51, %s67
      %p69 = scmp.eq.s32.totalorder %s22, 0
      %p70 = por %p68, %p69
      %s71 = ssub.s32 %s23, %s42
      %s72 = ssub.s32 %s24, %s38
      %s73 = sor.u32 %s71, %s72
      %p74 = scmp.eq.s32.totalorder %s73, 0
      %s76 = sadd.s32 %s75, 1
      %s77 = scalar_select %p74, %s75, %s76
      %p80 = pneg %p74
      %p81 = scmp.eq.s32.totalorder %s16, 1
      %p82 = por %p80, %p81
      %p83 = scmp.ne.s32.totalorder %s75, %s78
      %p84 = scmp.eq.s32.totalorder %s16, 0
      %p85 = por %p83, %p84
      %p86 = scmp.ne.s32.totalorder %s75, %s78
      %p87 = scmp.eq.s32.totalorder %s21, 1
      %p88 = por %p86, %p87
      %p89 = scmp.ne.s32.totalorder %s78, %s79
      %p90 = scmp.eq.s32.totalorder %s21, 0
      %p91 = por %p89, %p90
      %p92 = scmp.ne.s32.totalorder %s78, %s79
      %p93 = scmp.eq.s32.totalorder %s22, 1
      %p94 = por %p92, %p93
      %p96 = scmp.ne.s32.totalorder %s79, %s95
      %p97 = scmp.eq.s32.totalorder %s22, 0
      %p98 = por %p96, %p97
      %s99 = ssub.s32 %s23, %s42
      %s100 = ssub.s32 %s25, %s34
      %s101 = sor.u32 %s99, %s100
      %p102 = scmp.eq.s32.totalorder %s101, 0
      %s104 = sadd.s32 %s103, 1
      %s105 = scalar_select %p102, %s103, %s104
      %p108 = pneg %p102
      %p109 = scmp.eq.s32.totalorder %s16, 1
      %p110 = por %p108, %p109
      %p111 = scmp.ne.s32.totalorder %s103, %s106
      %p112 = scmp.eq.s32.totalorder %s16, 0
      %p113 = por %p111, %p112
      %p114 = scmp.ne.s32.totalorder %s103, %s106
      %p115 = scmp.eq.s32.totalorder %s21, 1
      %p116 = por %p114, %p115
      %p117 = scmp.ne.s32.totalorder %s106, %s107
      %p118 = scmp.eq.s32.totalorder %s21, 0
      %p119 = por %p117, %p118
      %p120 = scmp.ne.s32.totalorder %s106, %s107
      %p121 = scmp.eq.s32.totalorder %s22, 1
      %p122 = por %p120, %p121
      %p124 = scmp.ne.s32.totalorder %s107, %s123
      %p125 = scmp.eq.s32.totalorder %s22, 0
      %p126 = por %p124, %p125
      %s127 = ssub.s32 %s23, %s42
      %s128 = ssub.s32 %s25, %s34
      %s129 = sor.u32 %s127, %s128
      %p130 = scmp.eq.s32.totalorder %s129, 0
      %s132 = sadd.s32 %s131, 1
      %s133 = scalar_select %p130, %s131, %s132
      %p136 = pneg %p130
      %p137 = scmp.eq.s32.totalorder %s16, 1
      %p138 = por %p136, %p137
      %p139 = scmp.ne.s32.totalorder %s131, %s134
      %p140 = scmp.eq.s32.totalorder %s16, 0
      %p141 = por %p139, %p140
      %p142 = scmp.ne.s32.totalorder %s131, %s134
      %p143 = scmp.eq.s32.totalorder %s21, 1
      %p144 = por %p142, %p143
      %p145 = scmp.ne.s32.totalorder %s134, %s135
      %p146 = scmp.eq.s32.totalorder %s21, 0
      %p147 = por %p145, %p146
      %p148 = scmp.ne.s32.totalorder %s134, %s135
      %p149 = scmp.eq.s32.totalorder %s22, 1
      %p150 = por %p148, %p149
      %p152 = scmp.ne.s32.totalorder %s135, %s151
      %p153 = scmp.eq.s32.totalorder %s22, 0
      %p154 = por %p152, %p153
      %s155 = ssub.s32 %s23, %s42
      %s156 = ssub.s32 %s24, %s38
      %s157 = sor.u32 %s155, %s156
      %s158 = ssub.s32 %s25, %s34
      %s159 = sor.u32 %s157, %s158
      %p160 = scmp.eq.s32.totalorder %s159, 0
      %s162 = sadd.s32 %s161, 1
      %s163 = scalar_select %p160, %s161, %s162
      %p166 = pneg %p160
      %p167 = scmp.eq.s32.totalorder %s16, 1
      %p168 = por %p166, %p167
      %p169 = scmp.ne.s32.totalorder %s161, %s164
      %p170 = scmp.eq.s32.totalorder %s16, 0
      %p171 = por %p169, %p170
      %p172 = scmp.ne.s32.totalorder %s161, %s164
      %p173 = scmp.eq.s32.totalorder %s21, 1
      %p174 = por %p172, %p173
      %p175 = scmp.ne.s32.totalorder %s164, %s165
      %p176 = scmp.eq.s32.totalorder %s21, 0
      %p177 = por %p175, %p176
      %p178 = scmp.ne.s32.totalorder %s164, %s165
      %p179 = scmp.eq.s32.totalorder %s22, 1
      %p180 = por %p178, %p179
      %p182 = scmp.ne.s32.totalorder %s165, %s181
      %p183 = scmp.eq.s32.totalorder %s22, 0
      %p184 = por %p182, %p183
      %p185 = scmp.le.s32.totalorder 1, %s16
      %p186 = scmp.lt.s32.totalorder %s16, 3
      %p187 = pnand %p185, %p186
      %p188 = pneg %p187
      // Predicated region
      $region9: #{tpu_custom_call.1} parent=5 // pred_check
        _
      $region10: #{tpu_custom_call.1} parent=5 // pred_check_branch
        %190 = sbr.rel (%p187) target = $region12
      $region11: #{tpu_custom_call.1} parent=5 // pred_region
        %s191 = ssub.s32 %s16, 1
      $region12: #{tpu_custom_call.1} parent=5 // pred_fallthru
        _
      %p192 = scmp.lt.s32.totalorder %s16, 2
      // Predicated region
      $region13: #{tpu_custom_call.1} parent=5 // pred_check
        %p193 = pneg %p192
      $region14: #{tpu_custom_call.1} parent=5 // pred_check_branch
        %195 = sbr.rel (%p193) target = $region16
      $region15: #{tpu_custom_call.1} parent=5 // pred_region
        // Predicated region
        $region17: #{tpu_custom_call.1} parent=15 // pred_check
          %p196 = pneg %p57
        $region18: #{tpu_custom_call.1} parent=15 // pred_check_branch
          %198 = sbr.rel (%p196) target = $region20
        $region19: #{tpu_custom_call.1} parent=15 // pred_region
          %s199 = smul.u32 2, %s24
          %p200 = scmp.lt.s32.totalorder %s23, 1
          %s201 = scalar_select %p200, %s23, 1
          %p202 = scmp.lt.s32.totalorder %s199, 1
          %s203 = scalar_select %p202, %s199, 1
          %s204 = smul.addr %s201, 2
          %s205 = sadd.s32 %s203, %s204
          %s206 = smul.addr %s205, 4
          %s207 = scalar_lea.vmem %s0, %s206
          %s208 = smul.u32 2, %s24
        $region20: #{tpu_custom_call.1} parent=15 // pred_fallthru
          _
        // Predicated region
        $region21: #{tpu_custom_call.1} parent=15 // pred_check
          %p209 = pneg %p85
        $region22: #{tpu_custom_call.1} parent=15 // pred_check_branch
          %211 = sbr.rel (%p209) target = $region24
        $region23: #{tpu_custom_call.1} parent=15 // pred_region
          %s212 = smul.u32 2, %s24
          %p213 = scmp.lt.s32.totalorder %s23, 1
          %s214 = scalar_select %p213, %s23, 1
          %p215 = scmp.lt.s32.totalorder %s212, 1
          %s216 = scalar_select %p215, %s212, 1
          %s217 = smul.addr %s214, 2
          %s218 = sadd.s32 %s216, %s217
          %s219 = smul.addr %s218, 8
          %s220 = scalar_lea.vmem %s1, %s219
          %s221 = smul.u32 2, %s24
        $region24: #{tpu_custom_call.1} parent=15 // pred_fallthru
          _
        // Predicated region
        $region25: #{tpu_custom_call.1} parent=15 // pred_check
          %p222 = pneg %p113
        $region26: #{tpu_custom_call.1} parent=15 // pred_check_branch
          %224 = sbr.rel (%p222) target = $region28
        $region27: #{tpu_custom_call.1} parent=15 // pred_region
          %p225 = scmp.lt.s32.totalorder %s23, 1
          %s226 = scalar_select %p225, %s23, 1
          %p227 = scmp.lt.s32.totalorder %s25, 0
          %s228 = scalar_select %p227, %s25, 0
          %s229 = smul.addr %s226, 4
          %s230 = sadd.s32 %s228, %s229
          %s231 = smul.addr %s230, 4
          %s232 = scalar_lea.vmem %s2, %s231
        $region28: #{tpu_custom_call.1} parent=15 // pred_fallthru
          _
        // Predicated region
        $region29: #{tpu_custom_call.1} parent=15 // pred_check
          %p233 = pneg %p141
        $region30: #{tpu_custom_call.1} parent=15 // pred_check_branch
          %235 = sbr.rel (%p233) target = $region32
        $region31: #{tpu_custom_call.1} parent=15 // pred_region
          %s236 = sand.u32 %s131, 1
          %s237 = scalar_lea.sflag [#allocation3], %s236
          %s238 = sand.u32 %s131, 1
          %s239 = smul.addr %s238, 8
          %s240 = scalar_lea.vmem [#allocation2], %s239
          %s242 = ssub.s32 128, 128
          %243 = vsyncadd %s237, %s242
          %s244 = sadd.s32 %s25, %s23
          %s245 = smul.addr %s244, 128
          %s246 = scalar_lea.hbm %s3, %s245
          %s248 = sshll.u32 %s240, 4
          %s249 = int_to_ptr.vmem [resolvable:$true] %s248
          %251 = dma.hbm_to_vmem [thread:$0]  %s246, 128, %s249, %s237
        $region32: #{tpu_custom_call.1} parent=15 // pred_fallthru
          _
      $region16: #{tpu_custom_call.1} parent=5 // pred_fallthru
        _
      %p252 = scmp.le.s32.totalorder 1, %s16
      %p253 = scmp.lt.s32.totalorder %s16, 3
      %p254 = pnand %p252, %p253
      %p255 = pneg %p254
      // Predicated region
      $region33: #{tpu_custom_call.1} parent=5 // pred_check
        _
      $region34: #{tpu_custom_call.1} parent=5 // pred_check_branch
        %257 = sbr.rel (%p254) target = $region36
      $region35: #{tpu_custom_call.1} parent=5 // pred_region
        %s258 = ssub.s32 %s16, 1
        %s259 = sand.u32 %s134, 1
        %s260 = scalar_lea.sflag [#allocation3], %s259
        %s261 = sand.u32 %s134, 1
        %s262 = smul.addr %s261, 8
        %s263 = scalar_lea.vmem [#allocation2], %s262
        // Predicated region
        $region37: #{tpu_custom_call.1} parent=35 // pred_check
          %p264 = pneg %p147
        $region38: #{tpu_custom_call.1} parent=35 // pred_check_branch
          %266 = sbr.rel (%p264) target = $region40
        $region39: #{tpu_custom_call.1} parent=35 // pred_region
          %267 = dma.done %s260, 128
        $region40: #{tpu_custom_call.1} parent=35 // pred_fallthru
          _
        %s268 = smul.u32 2, %s27
        %p269 = scmp.lt.s32.totalorder %s26, 1
        %s270 = scalar_select %p269, %s26, 1
        %p271 = scmp.lt.s32.totalorder %s268, 1
        %s272 = scalar_select %p271, %s268, 1
        %s273 = smul.addr %s270, 2
        %s274 = sadd.s32 %s272, %s273
        %s275 = smul.addr %s274, 4
        %s276 = scalar_lea.vmem %s0, %s275
        %p277 = pneg %p63
        %p278 = pneg %p60
        %s279 = smul.u32 2, %s27
        %p280 = scmp.lt.s32.totalorder %s26, 1
        %s281 = scalar_select %p280, %s26, 1
        %p282 = scmp.lt.s32.totalorder %s279, 1
        %s283 = scalar_select %p282, %s279, 1
        %s284 = smul.addr %s281, 2
        %s285 = sadd.s32 %s283, %s284
        %s286 = smul.addr %s285, 8
        %s287 = scalar_lea.vmem %s1, %s286
        %p288 = pneg %p91
        %p289 = pneg %p88
        %p290 = scmp.lt.s32.totalorder %s26, 1
        %s291 = scalar_select %p290, %s26, 1
        %p292 = scmp.lt.s32.totalorder %s28, 0
        %s293 = scalar_select %p292, %s28, 0
        %s294 = smul.addr %s291, 4
        %s295 = sadd.s32 %s293, %s294
        %s296 = smul.addr %s295, 4
        %s297 = scalar_lea.vmem %s2, %s296
        %p298 = pneg %p119
        %p299 = pneg %p116
        %s300 = sand.u32 %s134, 1
        %s301 = scalar_lea.sflag [#allocation3], %s300
        %s302 = sand.u32 %s134, 1
        %s303 = smul.addr %s302, 8
        %s304 = scalar_lea.vmem [#allocation2], %s303
        %p305 = pneg %p147
        %p306 = pneg %p144
        %p307 = pneg %p177
        %p308 = pneg %p174
        %s309 = sand.u32 %s164, 1
        %s310 = scalar_lea.sflag [#allocation4], %s309
        %s311 = sand.u32 %s164, 1
        %s312 = smul.addr %s311, 16
        %s313 = scalar_lea.vmem [#allocation5], %s312
        %s314 = smul.u32 2, %s27
        %p315 = scmp.lt.s32.totalorder %s26, 1
        %s316 = scalar_select %p315, %s26, 1
        %p317 = scmp.lt.s32.totalorder %s314, 1
        %s318 = scalar_select %p317, %s314, 1
        %s319 = smul.addr %s316, 2
        %s320 = sadd.s32 %s318, %s319
        %s321 = smul.addr %s320, 4
        %s322 = scalar_lea.vmem %s0, %s321
        %s323 = smul.u32 2, %s27
        %s324 = smul.u32 2, %s27
        %p325 = scmp.lt.s32.totalorder %s26, 1
        %s326 = scalar_select %p325, %s26, 1
        %p327 = scmp.lt.s32.totalorder %s324, 1
        %s328 = scalar_select %p327, %s324, 1
        %s329 = smul.addr %s326, 2
        %s330 = sadd.s32 %s328, %s329
        %s331 = smul.addr %s330, 8
        %s332 = scalar_lea.vmem %s1, %s331
        %s333 = smul.u32 2, %s27
        %p334 = scmp.lt.s32.totalorder %s26, 1
        %s335 = scalar_select %p334, %s26, 1
        %p336 = scmp.lt.s32.totalorder %s28, 0
        %s337 = scalar_select %p336, %s28, 0
        %s338 = smul.addr %s335, 4
        %s339 = sadd.s32 %s337, %s338
        %s340 = smul.addr %s339, 4
        %s341 = scalar_lea.vmem %s2, %s340
        %s342 = smul.u32 2, %s27
        %v344 = vld [vmem:[%s322] sm:$0xf]
        %v345 = vld [vmem:[%s322 + $0x4] sm:$0xf]
        %v346 = vld [vmem:[%s332] sm:$0xff]
        %v347 = vld [vmem:[%s332 + $0x8] sm:$0xff]
        %v348 = vld [vmem:[%s341] sm:$0xf]
        %v349 = vld [vmem:[%s341 + $0x4] sm:$0xf]
        %v350 = vld [vmem:[%s341 + $0x8] sm:$0xf]
        %v351 = vld [vmem:[%s341 + $0xc] sm:$0xf]
        %v352 = vld [vmem:[%s263] sm:$0xff]
        %354 = vset.pattern.permute.xlu0 0
        %355 = vperm.xlu0 %354, %v346
        %v356 = vpop.permute.xlu0 %355
        %359 = vset.pattern.permute.xlu0 0
        %360 = vperm.xlu0 %359, %v347
        %v361 = vpop.permute.xlu0 %360
        %v363 = vlaneseq
        %v364 = vshrl.u32 %v363, 7
        %v365 = vsub.s32 0, %v364
        %v366 = vrot.slane %v352, %v365
        %v367 = vsub.f32 %v356, %v366
        %v368 = vsub.f32 %v361, %v366
        %v369 = vand.u32 2147483647, %v367
        %v370 = vand.u32 2147483647, %v368
        %371 = vset.pattern.permute.xlu0 1
        %372 = vperm.xlu0 %371, %v346
        %v373 = vpop.permute.xlu0 %372
        %375 = vset.pattern.permute.xlu0 1
        %376 = vperm.xlu0 %375, %v347
        %v377 = vpop.permute.xlu0 %376
        %v379 = vlaneseq
        %v380 = vshrl.u32 %v379, 7
        %v381 = vsub.s32 1, %v380
        %v382 = vrot.slane %v352, %v381
        %v383 = vsub.f32 %v373, %v382
        %v384 = vsub.f32 %v377, %v382
        %v385 = vand.u32 2147483647, %v383
        %v386 = vand.u32 2147483647, %v384
        %v387 = vadd.f32 %v369, %v385
        %v388 = vadd.f32 %v370, %v386
        %389 = vset.pattern.permute.xlu0 2
        %390 = vperm.xlu0 %389, %v346
        %v391 = vpop.permute.xlu0 %390
        %393 = vset.pattern.permute.xlu0 2
        %394 = vperm.xlu0 %393, %v347
        %v395 = vpop.permute.xlu0 %394
        %v397 = vlaneseq
        %v398 = vshrl.u32 %v397, 7
        %v399 = vsub.s32 2, %v398
        %v400 = vrot.slane %v352, %v399
        %v401 = vsub.f32 %v391, %v400
        %v402 = vsub.f32 %v395, %v400
        %v403 = vand.u32 2147483647, %v401
        %v404 = vand.u32 2147483647, %v402
        %v405 = vadd.f32 %v387, %v403
        %v406 = vadd.f32 %v388, %v404
        %407 = vset.pattern.permute.xlu0 3
        %408 = vperm.xlu0 %407, %v346
        %v409 = vpop.permute.xlu0 %408
        %411 = vset.pattern.permute.xlu0 3
        %412 = vperm.xlu0 %411, %v347
        %v413 = vpop.permute.xlu0 %412
        %v415 = vlaneseq
        %v416 = vshrl.u32 %v415, 7
        %v417 = vsub.s32 3, %v416
        %v418 = vrot.slane %v352, %v417
        %v419 = vsub.f32 %v409, %v418
        %v420 = vsub.f32 %v413, %v418
        %v421 = vand.u32 2147483647, %v419
        %v422 = vand.u32 2147483647, %v420
        %v423 = vadd.f32 %v405, %v421
        %v424 = vadd.f32 %v406, %v422
        %v427 = vunpack.c.l.b16 %v344
        %v428 = vunpack.c.l.b16 %v345
        %v429 = vpack.c.b16 %v428, %v427
        %v434 = vunpack.c.l.b16 %v348
        %v435 = vunpack.c.l.b16 %v349
        %v436 = vunpack.c.l.b16 %v350
        %v437 = vunpack.c.l.b16 %v351
        %v438 = vpack.c.b16 %v435, %v434
        %v439 = vpack.c.b16 %v437, %v436
        %vm442 = vcmask 261120
        %v444 = vsel %vm442, %v429, 0
        %446 = vmatprep.subr.bf16.mxu0 0
        %447 = vmatpush1.bf16.msra.mxu0 0
        %448 = vmatprep.subr.bf16.mxu0 0
        %449 = vmatpush1.bf16.msra.mxu0 0
        %450 = vmatprep.subr.bf16.mxu0 0
        %451 = vmatpush1.bf16.msra.mxu0 0
        %452 = vmatprep.subr.bf16.mxu0 0
        %453 = vmatpush1.bf16.msra.mxu0 0
        %454 = vmatprep.subr.bf16.mxu0 0
        %455 = vmatpush1.bf16.msra.mxu0 0
        %456 = vmatprep.subr.bf16.mxu0 0
        %457 = vmatpush1.bf16.msra.mxu0 0
        %458 = vmatprep.subr.bf16.mxu0 0
        %459 = vmatpush1.bf16.msra.mxu0 %v439
        %460 = vmatprep.subr.bf16.mxu0 0
        %461 = vmatpush1.bf16.msra.mxu0 %v438
        %462 = vmatprep.subr.bf16.mxu0 0
        %463 = vmatpush2.bf16.msra.mxu0 0
        %464 = vmatprep.subr.bf16.mxu0 0
        %465 = vmatpush2.bf16.msra.mxu0 0
        %466 = vmatprep.subr.bf16.mxu0 0
        %467 = vmatpush2.bf16.msra.mxu0 0
        %468 = vmatprep.subr.bf16.mxu0 0
        %469 = vmatpush2.bf16.msra.mxu0 0
        %470 = vmatprep.subr.bf16.mxu0 0
        %471 = vmatpush2.bf16.msra.mxu0 0
        %472 = vmatprep.subr.bf16.mxu0 0
        %473 = vmatpush2.bf16.msra.mxu0 0
        %474 = vmatprep.subr.bf16.mxu0 0
        %475 = vmatpush2.bf16.msra.mxu0 0
        %476 = vmatprep.subr.bf16.mxu0 0
        %477 = vmatpush2.bf16.msra.mxu0 0
        %478 = vmatprep.mubr.bf16.mxu0 0
        %479 = vmatmul.mubr.bf16.gmra.mxu0 %v444
        %v480 = vpop.f32.mrf.mxu0
        %v481 = vadd.f32 %v423, %v480
        %v482 = vpop.f32.mrf.mxu0
        %v483 = vpop.f32.mrf.mxu0
        %v484 = vadd.f32 %v424, %v483
        %v485 = vpop.f32.mrf.mxu0
        %486 = vdwg.mxu0
        %487 = vrot.lane.b32.xlu0 %v346, 2
        %v488 = vpop.permute.xlu0 %487
        %489 = vrot.lane.b32.xlu0 %v347, 2
        %v490 = vpop.permute.xlu0 %489
        %v493 = vsub.f32 %v346, %v488
        %v494 = vsub.f32 %v347, %v490
        %497 = vrot.lane.b32.xlu0 %v493, 127
        %v498 = vpop.permute.xlu0 %497
        %499 = vrot.lane.b32.xlu0 %v494, 127
        %v500 = vpop.permute.xlu0 %499
        %v503 = vmul.f32 %v493, %v498
        %v504 = vmul.f32 %v494, %v500
        %v506 = vrot.slane %v352, 6
        %v508 = vsub.f32 %v352, %v506
        %v510 = vrot.slane %v508, 1
        %v512 = vmul.f32 %v508, %v510
        %513 = vset.pattern.permute.xlu0 6
        %514 = vperm.xlu0 %513, %v346
        %v515 = vpop.permute.xlu0 %514
        %517 = vset.pattern.permute.xlu0 6
        %518 = vperm.xlu0 %517, %v347
        %v519 = vpop.permute.xlu0 %518
        %v521 = vlaneseq
        %v522 = vshrl.u32 %v521, 7
        %v523 = vsub.s32 6, %v522
        %v524 = vrot.slane %v352, %v523
        %v525 = vmin.f32 %v515, %v524
        %v526 = vmin.f32 %v519, %v524
        %527 = vset.pattern.permute.xlu0 4
        %528 = vperm.xlu0 %527, %v346
        %v529 = vpop.permute.xlu0 %528
        %531 = vset.pattern.permute.xlu0 4
        %532 = vperm.xlu0 %531, %v347
        %v533 = vpop.permute.xlu0 %532
        %v535 = vlaneseq
        %v536 = vshrl.u32 %v535, 7
        %v537 = vsub.s32 4, %v536
        %v538 = vrot.slane %v352, %v537
        %v539 = vmax.f32 %v529, %v538
        %v540 = vmax.f32 %v533, %v538
        %v541 = vsub.f32 %v525, %v539
        %v542 = vsub.f32 %v526, %v540
        %v543 = vmax.f32 %v541, 0.0
        %v544 = vmax.f32 %v542, 0.0
        %545 = vset.pattern.permute.xlu0 7
        %546 = vperm.xlu0 %545, %v346
        %v547 = vpop.permute.xlu0 %546
        %549 = vset.pattern.permute.xlu0 7
        %550 = vperm.xlu0 %549, %v347
        %v551 = vpop.permute.xlu0 %550
        %v553 = vlaneseq
        %v554 = vshrl.u32 %v553, 7
        %v555 = vsub.s32 7, %v554
        %v556 = vrot.slane %v352, %v555
        %v557 = vmin.f32 %v547, %v556
        %v558 = vmin.f32 %v551, %v556
        %559 = vset.pattern.permute.xlu0 5
        %560 = vperm.xlu0 %559, %v346
        %v561 = vpop.permute.xlu0 %560
        %563 = vset.pattern.permute.xlu0 5
        %564 = vperm.xlu0 %563, %v347
        %v565 = vpop.permute.xlu0 %564
        %v567 = vlaneseq
        %v568 = vshrl.u32 %v567, 7
        %v569 = vsub.s32 5, %v568
        %v570 = vrot.slane %v352, %v569
        %v571 = vmax.f32 %v561, %v570
        %v572 = vmax.f32 %v565, %v570
        %v573 = vsub.f32 %v557, %v571
        %v574 = vsub.f32 %v558, %v572
        %v575 = vmax.f32 %v573, 0.0
        %v576 = vmax.f32 %v574, 0.0
        %v577 = vmul.f32 %v543, %v575
        %v578 = vmul.f32 %v544, %v576
        %580 = vset.pattern.permute.xlu0 6
        %581 = vperm.xlu0 %580, %v503
        %v582 = vpop.permute.xlu0 %581
        %585 = vset.pattern.permute.xlu0 6
        %586 = vperm.xlu0 %585, %v504
        %v587 = vpop.permute.xlu0 %586
        %v589 = vlaneseq
        %v590 = vshrl.u32 %v589, 7
        %v591 = vsub.s32 6, %v590
        %v592 = vrot.slane %v512, %v591
        %v593 = vadd.f32 %v582, %v592
        %v594 = vadd.f32 %v587, %v592
        %v595 = vsub.f32 %v593, %v577
        %v596 = vsub.f32 %v594, %v578
        %v597 = vmax.f32 %v515, %v524
        %v598 = vmax.f32 %v519, %v524
        %v599 = vmin.f32 %v529, %v538
        %v600 = vmin.f32 %v533, %v538
        %v601 = vsub.f32 %v597, %v599
        %v602 = vsub.f32 %v598, %v600
        %v603 = vmax.f32 %v547, %v556
        %v604 = vmax.f32 %v551, %v556
        %v605 = vmin.f32 %v561, %v570
        %v606 = vmin.f32 %v565, %v570
        %v607 = vsub.f32 %v603, %v605
        %v608 = vsub.f32 %v604, %v606
        %v609 = vmul.f32 %v601, %v607
        %v610 = vmul.f32 %v602, %v608
        %v611 = vmax.f32 %v595, 1e-09
        %v612 = vmax.f32 %v596, 1e-09
        %v613 = vrcp.pop %v611
        %v614 = vrcp.pop %v612
        %v615 = vmax.f32 %v609, 1e-09
        %v616 = vmax.f32 %v610, 1e-09
        %v617 = vrcp.pop %v615
        %v618 = vrcp.pop %v616
        %v619 = vmul.f32 %v577, %v613
        %v620 = vmul.f32 %v578, %v614
        %v621 = vsub.f32 %v619, 1.0
        %v622 = vsub.f32 %v620, 1.0
        %v623 = vmul.f32 %v595, %v617
        %v624 = vmul.f32 %v596, %v618
        %v625 = vadd.f32 %v621, %v623
        %v626 = vadd.f32 %v622, %v624
        %v627 = vmul.f32 %v625, -1.0
        %v628 = vmul.f32 %v626, -1.0
        %v629 = vadd.f32 %v481, %v627
        %v630 = vadd.f32 %v484, %v628
        %631 = vst [vmem:[%s313] sm:$0xff] %v629
        %632 = vst [vmem:[%s313 + $0x8] sm:$0xff] %v630
        %s633 = sand.u32 %s164, 1
        %s634 = scalar_lea.sflag [#allocation4], %s633
        %s635 = sand.u32 %s164, 1
        %s636 = smul.addr %s635, 16
        %s637 = scalar_lea.vmem [#allocation5], %s636
        // Predicated region
        $region41: #{tpu_custom_call.1} parent=35 // pred_check
          %p638 = pneg %p174
        $region42: #{tpu_custom_call.1} parent=35 // pred_check_branch
          %640 = sbr.rel (%p638) target = $region44
        $region43: #{tpu_custom_call.1} parent=35 // pred_region
          %s641 = smul.u32 2, %s27
          %s643 = ssub.s32 256, 256
          %644 = vsyncadd %s634, %s643
          %s645 = sadd.s32 %s28, %s641
          %s646 = smul.addr %s26, 2
          %s647 = sadd.s32 %s645, %s646
          %s648 = smul.addr %s647, 128
          %s649 = scalar_lea.hbm %s4, %s648
          %s650 = sshll.u32 %s637, 4
          %s651 = int_to_ptr.vmem [resolvable:$true] %s650
          %656 = dma.vmem_to_hbm [thread:$0]  %s651, 256, %s649, %s634, 128, 128, 8
        $region44: #{tpu_custom_call.1} parent=35 // pred_fallthru
          _
      $region36: #{tpu_custom_call.1} parent=5 // pred_fallthru
        _
      %p657 = scmp.le.s32.totalorder 2, %s16
      // Predicated region
      $region45: #{tpu_custom_call.1} parent=5 // pred_check
        %p658 = pneg %p657
      $region46: #{tpu_custom_call.1} parent=5 // pred_check_branch
        %660 = sbr.rel (%p658) target = $region48
      $region47: #{tpu_custom_call.1} parent=5 // pred_region
        %s661 = ssub.s32 %s16, 2
        // Predicated region
        $region49: #{tpu_custom_call.1} parent=47 // pred_check
          %p662 = pneg %p180
        $region50: #{tpu_custom_call.1} parent=47 // pred_check_branch
          %664 = sbr.rel (%p662) target = $region52
        $region51: #{tpu_custom_call.1} parent=47 // pred_region
          %s665 = sand.u32 %s165, 1
          %s666 = scalar_lea.sflag [#allocation4], %s665
          %s667 = sand.u32 %s165, 1
          %s668 = smul.addr %s667, 16
          %s669 = scalar_lea.vmem [#allocation5], %s668
          %670 = dma.done %s666, 256
        $region52: #{tpu_custom_call.1} parent=47 // pred_fallthru
          _
      $region48: #{tpu_custom_call.1} parent=5 // pred_fallthru
        _
    $region6: #{tpu_custom_call.1} parent=1 // loop_footer
      %s20 = sadd.s32 1, %s16
    $region7: #{tpu_custom_call.1} parent=1 // loop_footer_branch
      %15 = sbr.rel target = $region3
    $region8: #{tpu_custom_call.1} parent=1 // loop_exit
      _
    %671 = vsyncpa [#allocation3], 1
    %s672 = scalar_lea.sflag [#allocation3], 1
    %673 = vsyncpa %s672, 1
    %674 = vsyncpa [#allocation4], 1
    %s675 = scalar_lea.sflag [#allocation4], 1
    %676 = vsyncpa %s675, 1

</llo_original>
